<compile_context>
chip_gen: v5e
topology: v5e:2x2
jax: 0.10.0
libtpu: 0.0.40
codegen_flags: <defaults>
</compile_context>

<pallas_src>
import functools

import jax
import jax.numpy as jnp
from jax.experimental import pallas as pl
from jax.experimental.pallas import tpu as pltpu


def value_net_kernel(
    ems_ref, item_ref,
    w1e_ref, w1i_ref,          # (d_model, H) bf16
    wf_ref,                    # (2H, H) bf16  fused [W_e ; W_i]
    w4_ref,                    # (1, H) f32    final Linear weight as a row
    bias_ref,                  # (1, 3H) f32   [b1e | b1i | b_f]
    b4_ref,                    # (1, 1) f32 in SMEM
    out_ref,                   # (tile_b, 128) f32 lane-dense slab
):
    H = w4_ref.shape[1]

    ems = ems_ref[...].astype(jnp.bfloat16)
    item = item_ref[...].astype(jnp.bfloat16)

    b1e = bias_ref[:, 0:H]
    b1i = bias_ref[:, H:2 * H]
    b_f = bias_ref[:, 2 * H:3 * H]

    # ems_mlp / item_mlp first layers: Linear -> ReLU (f32 accumulation).
    h_e = jnp.maximum(
        jnp.dot(ems, w1e_ref[...], preferred_element_type=jnp.float32) + b1e, 0.0)
    h_i = jnp.maximum(
        jnp.dot(item, w1i_ref[...], preferred_element_type=jnp.float32) + b1i, 0.0)

    # Fused folded matmul: one K=2H accumulation chain, then ReLU.
    h = jnp.concatenate(
        [h_e.astype(jnp.bfloat16), h_i.astype(jnp.bfloat16)], axis=-1)   # (tile_b, 2H)
    h_f = jnp.maximum(
        jnp.dot(h, wf_ref[...], preferred_element_type=jnp.float32) + b_f, 0.0)

    # Final Linear(H -> 1) as VPU multiply + lane reduction, then Tanh.
    val = jnp.sum(h_f * w4_ref[...], axis=-1, keepdims=True) + b4_ref[0, 0]
    out_ref[...] = jnp.broadcast_to(jnp.tanh(val), out_ref.shape)


def _round_up(x, m):
    return ((x + m - 1) // m) * m


# Max batch tile: fills the 256-tall MXU on v6e/v7x; two full 128-tall passes
# on v5e.  Resident VMEM at tile_b=256 is < 2 MiB -> fine everywhere.
_TILE_CAP = 256


@functools.partial(jax.jit, static_argnames=())
def value_network_forward(ems_features, item_features, kp):
    B, d_model = ems_features.shape
    H = kp["w4"].shape[1]
    assert H % 128 == 0, "hidden_dim must be a multiple of 128 (lane tiling / bias slices)"

    # Pad the batch UP to the tile; small B -> a single grid step.
    if B <= _TILE_CAP:
        tile_b = _round_up(max(B, 8), 8)
        padded_B = tile_b
    else:
        tile_b = _TILE_CAP
        padded_B = _round_up(B, tile_b)

    if padded_B != B:
        pad = padded_B - B
        ems_features = jnp.pad(ems_features, ((0, pad), (0, 0)))
        item_features = jnp.pad(item_features, ((0, pad), (0, 0)))

    num_tiles = padded_B // tile_b
    grid = (num_tiles,)
    # Only shard the grid across TensorCores when there is enough balanced work.
    semantics = ("parallel",) if num_tiles >= 4 else ("arbitrary",)

    row_spec = pl.BlockSpec((tile_b, d_model), lambda i: (i, 0))

    def resident(shape):
        # Weights / biases: same block every grid step -> stay VMEM-resident.
        return pl.BlockSpec(shape, lambda i: (0, 0))

    out = pl.pallas_call(
        value_net_kernel,
        out_shape=jax.ShapeDtypeStruct((padded_B, 128), jnp.float32),
        grid=grid,
        in_specs=[
            row_spec,                                            # ems
            row_spec,                                            # item
            resident((d_model, H)),                              # w1e (bf16)
            resident((d_model, H)),                              # w1i (bf16)
            resident((2 * H, H)),                                # W_f (bf16, fused)
            resident((1, H)),                                    # w4 row (f32)
            resident((1, 3 * H)),                                # packed biases (f32)
            pl.BlockSpec(memory_space=pltpu.MemorySpace.SMEM),   # b4 scalar
        ],
        out_specs=pl.BlockSpec((tile_b, 128), lambda i: (i, 0)),
        compiler_params=pltpu.CompilerParams(
            dimension_semantics=semantics),
    )(ems_features, item_features,
      kp["w1e"], kp["w1i"], kp["wf"],
      kp["w4"], kp["bias"], kp["b4"])

    return out[:B, :1]


def init_params(key, d_model, hidden_dim):
    """Deterministic synthetic parameters (PyTorch Linear shapes, pre-transposed to (in, out))."""
    ks = jax.random.split(key, 12)

    def lin(k, fan_in, fan_out):
        return jax.random.normal(k, (fan_in, fan_out), jnp.float32) * (1.0 / jnp.sqrt(fan_in))

    w3_full = lin(ks[6], 2 * hidden_dim, hidden_dim)  # (2H, H)
    return {
        # ems_mlp
        "w1e": lin(ks[0], d_model, hidden_dim),
        "b1e": jax.random.normal(ks[1], (1, hidden_dim), jnp.float32) * 0.01,
        "w2e": lin(ks[2], hidden_dim, hidden_dim),
        "b2e": jax.random.normal(ks[3], (1, hidden_dim), jnp.float32) * 0.01,
        # item_mlp
        "w1i": lin(ks[4], d_model, hidden_dim),
        "b1i": jax.random.normal(ks[5], (1, hidden_dim), jnp.float32) * 0.01,
        "w2i": lin(ks[7], hidden_dim, hidden_dim),
        "b2i": jax.random.normal(ks[8], (1, hidden_dim), jnp.float32) * 0.01,
        # final_mlp
        "w3a": w3_full[:hidden_dim, :],     # acts on ems_out
        "w3b": w3_full[hidden_dim:, :],     # acts on item_out
        "b3": jax.random.normal(ks[9], (1, hidden_dim), jnp.float32) * 0.01,
        "w4": lin(ks[10], hidden_dim, 1),
        "b4": jax.random.normal(ks[11], (1, 1), jnp.float32) * 0.01,
    }


def prepare_kernel_params(p):
    """Fold w2@w3 offline, fuse into one (2H,H) weight, pack biases, cast big weights to bf16."""
    W_e = p["w2e"] @ p["w3a"]
    W_i = p["w2i"] @ p["w3b"]
    W_f = jnp.concatenate([W_e, W_i], axis=0)                            # (2H, H)
    b_f = p["b2e"] @ p["w3a"] + p["b2i"] @ p["w3b"] + p["b3"]
    return {
        "w1e": p["w1e"].astype(jnp.bfloat16),
        "w1i": p["w1i"].astype(jnp.bfloat16),
        "wf": W_f.astype(jnp.bfloat16),
        "w4": p["w4"].T,                                                  # (1, H) f32
        "bias": jnp.concatenate([p["b1e"], p["b1i"], b_f], axis=1),       # (1, 3H) f32
        "b4": p["b4"],                                                    # (1, 1) f32
    }


def value_network_ref(ems, item, p):
    """Pure-JAX reference mirroring the original PyTorch forward (f32, unfolded)."""
    h_e = jnp.maximum(ems @ p["w1e"] + p["b1e"], 0.0)
    ems_out = h_e @ p["w2e"] + p["b2e"]
    h_i = jnp.maximum(item @ p["w1i"] + p["b1i"], 0.0)
    item_out = h_i @ p["w2i"] + p["b2i"]
    combined = jnp.concatenate([ems_out, item_out], axis=1)
    w3 = jnp.concatenate([p["w3a"], p["w3b"]], axis=0)
    h_f = jnp.maximum(combined @ w3 + p["b3"], 0.0)
    return jnp.tanh(h_f @ p["w4"] + p["b4"])


def value_network_kernel_ref(ems, item, kp):
    """Structural reference: same folded / fused / bf16-weight numerics as the kernel."""
    f32 = jnp.float32
    H = kp["w4"].shape[1]
    b1e, b1i, b_f = kp["bias"][:, :H], kp["bias"][:, H:2 * H], kp["bias"][:, 2 * H:]
    h_e = jnp.maximum(
        jnp.dot(ems.astype(jnp.bfloat16), kp["w1e"], preferred_element_type=f32) + b1e, 0.0)
    h_i = jnp.maximum(
        jnp.dot(item.astype(jnp.bfloat16), kp["w1i"], preferred_element_type=f32) + b1i, 0.0)
    h = jnp.concatenate([h_e.astype(jnp.bfloat16), h_i.astype(jnp.bfloat16)], axis=-1)
    h_f = jnp.maximum(
        jnp.dot(h, kp["wf"], preferred_element_type=f32) + b_f, 0.0)
    val = jnp.sum(h_f * kp["w4"], axis=-1, keepdims=True) + kp["b4"][0, 0]
    return jnp.tanh(val)


if __name__ == "__main__":
    d_model, hidden_dim, batch = 128, 256, 48

    key = jax.random.PRNGKey(0)
    k_ems, k_item, k_params = jax.random.split(key, 3)
    ems_features = jax.random.normal(k_ems, (batch, d_model), jnp.float32)
    item_features = jax.random.normal(k_item, (batch, d_model), jnp.float32)

    raw_params = init_params(k_params, d_model, hidden_dim)
    kernel_params = prepare_kernel_params(raw_params)

    out = value_network_forward(ems_features, item_features, kernel_params)
    out = jax.block_until_ready(out)
    assert out.shape == (batch, 1)

    # Structural check: identical folded / fused / bf16-weight math in pure JAX.
    ref_struct = value_network_kernel_ref(ems_features, item_features, kernel_params)
    assert jnp.allclose(out, ref_struct, atol=2e-2, rtol=2e-2), "mismatch vs structural ref"

    # Semantic check: original f32 unfolded forward (bf16 weights -> loose tolerance).
    ref_exact = value_network_ref(ems_features, item_features, raw_params)
    assert jnp.allclose(out, ref_exact, atol=6e-2, rtol=6e-2), "mismatch vs f32 reference"

    print("KERNEL_OK")
</pallas_src>

<mosaic_0001>
module attributes {stable_mosaic.version = 11 : i64} {
  func.func @value_net_kernel(%arg0: i32, %arg1: memref<48x128xf32, #tpu.memory_space<vmem>>, %arg2: memref<48x128xf32, #tpu.memory_space<vmem>>, %arg3: memref<128x256xbf16, #tpu.memory_space<vmem>>, %arg4: memref<128x256xbf16, #tpu.memory_space<vmem>>, %arg5: memref<512x256xbf16, #tpu.memory_space<vmem>>, %arg6: memref<1x256xf32, #tpu.memory_space<vmem>>, %arg7: memref<1x768xf32, #tpu.memory_space<vmem>>, %arg8: memref<1x1xf32, #tpu.memory_space<smem>>, %arg9: memref<48x128xf32, #tpu.memory_space<vmem>>) attributes {dimension_semantics = [#tpu.dimension_semantics<arbitrary>], iteration_bounds = array<i64: 1>, scalar_prefetch = 0 : i64, scratch_operands = 0 : i64, tpu.core_type = #tpu.core_type<tc>, window_params = [{transform_indices = @transform_0, window_bounds = array<i64: 48, 128>}, {transform_indices = @transform_1, window_bounds = array<i64: 48, 128>}, {pipeline_mode = #tpu.pipeline_mode<synchronous>, transform_indices = @transform_2, window_bounds = array<i64: 128, 256>}, {pipeline_mode = #tpu.pipeline_mode<synchronous>, transform_indices = @transform_3, window_bounds = array<i64: 128, 256>}, {pipeline_mode = #tpu.pipeline_mode<synchronous>, transform_indices = @transform_4, window_bounds = array<i64: 512, 256>}, {pipeline_mode = #tpu.pipeline_mode<synchronous>, transform_indices = @transform_5, window_bounds = array<i64: 1, 256>}, {pipeline_mode = #tpu.pipeline_mode<synchronous>, transform_indices = @transform_6, window_bounds = array<i64: 1, 768>}, {transform_indices = @transform_7, window_bounds = array<i64: 1, 1>}, {transform_indices = @transform_8, window_bounds = array<i64: 48, 128>}]} {
    %c0 = arith.constant 0 : index
    %c0_0 = arith.constant 0 : index
    %0 = vector.load %arg1[%c0, %c0_0] : memref<48x128xf32, #tpu.memory_space<vmem>>, vector<48x128xf32>
    %1 = arith.truncf %0 : vector<48x128xf32> to vector<48x128xbf16>
    %c0_1 = arith.constant 0 : index
    %c0_2 = arith.constant 0 : index
    %2 = vector.load %arg2[%c0_1, %c0_2] : memref<48x128xf32, #tpu.memory_space<vmem>>, vector<48x128xf32>
    %3 = arith.truncf %2 : vector<48x128xf32> to vector<48x128xbf16>
    %c0_3 = arith.constant 0 : index
    %c0_4 = arith.constant 0 : index
    %4 = vector.load %arg7[%c0_3, %c0_4] : memref<1x768xf32, #tpu.memory_space<vmem>>, vector<1x256xf32>
    %c0_5 = arith.constant 0 : index
    %c256 = arith.constant 256 : index
    %5 = vector.load %arg7[%c0_5, %c256] : memref<1x768xf32, #tpu.memory_space<vmem>>, vector<1x256xf32>
    %c0_6 = arith.constant 0 : index
    %c512 = arith.constant 512 : index
    %6 = vector.load %arg7[%c0_6, %c512] : memref<1x768xf32, #tpu.memory_space<vmem>>, vector<1x256xf32>
    %c0_7 = arith.constant 0 : index
    %c0_8 = arith.constant 0 : index
    %7 = vector.load %arg3[%c0_7, %c0_8] : memref<128x256xbf16, #tpu.memory_space<vmem>>, vector<128x256xbf16>
    %cst = arith.constant dense<0.000000e+00> : vector<48x256xf32>
    %8 = tpu.matmul %1, %7, %cst {dimension_numbers = #tpu.dot_dimension_numbers<[1], [0], [0], [1], [0, 0, 1, 1], [], []>} : vector<48x128xbf16>, vector<128x256xbf16>, vector<48x256xf32> -> vector<48x256xf32>
    %9 = vector.broadcast %4 : vector<1x256xf32> to vector<48x256xf32>
    %10 = arith.addf %8, %9 : vector<48x256xf32>
    %cst_9 = arith.constant 0.000000e+00 : f32
    %11 = vector.broadcast %cst_9 : f32 to vector<48x256xf32>
    %12 = arith.maximumf %10, %11 : vector<48x256xf32>
    %c0_10 = arith.constant 0 : index
    %c0_11 = arith.constant 0 : index
    %13 = vector.load %arg4[%c0_10, %c0_11] : memref<128x256xbf16, #tpu.memory_space<vmem>>, vector<128x256xbf16>
    %cst_12 = arith.constant dense<0.000000e+00> : vector<48x256xf32>
    %14 = tpu.matmul %3, %13, %cst_12 {dimension_numbers = #tpu.dot_dimension_numbers<[1], [0], [0], [1], [0, 0, 1, 1], [], []>} : vector<48x128xbf16>, vector<128x256xbf16>, vector<48x256xf32> -> vector<48x256xf32>
    %15 = vector.broadcast %5 : vector<1x256xf32> to vector<48x256xf32>
    %16 = arith.addf %14, %15 : vector<48x256xf32>
    %cst_13 = arith.constant 0.000000e+00 : f32
    %17 = vector.broadcast %cst_13 : f32 to vector<48x256xf32>
    %18 = arith.maximumf %16, %17 : vector<48x256xf32>
    %19 = arith.truncf %12 : vector<48x256xf32> to vector<48x256xbf16>
    %20 = arith.truncf %18 : vector<48x256xf32> to vector<48x256xbf16>
    %21 = tpu.concatenate %19, %20 in 1 : vector<48x256xbf16>, vector<48x256xbf16> -> vector<48x512xbf16>
    %c0_14 = arith.constant 0 : index
    %c0_15 = arith.constant 0 : index
    %22 = vector.load %arg5[%c0_14, %c0_15] : memref<512x256xbf16, #tpu.memory_space<vmem>>, vector<512x256xbf16>
    %cst_16 = arith.constant dense<0.000000e+00> : vector<48x256xf32>
    %23 = tpu.matmul %21, %22, %cst_16 {dimension_numbers = #tpu.dot_dimension_numbers<[1], [0], [0], [1], [0, 0, 1, 1], [], []>} : vector<48x512xbf16>, vector<512x256xbf16>, vector<48x256xf32> -> vector<48x256xf32>
    %24 = vector.broadcast %6 : vector<1x256xf32> to vector<48x256xf32>
    %25 = arith.addf %23, %24 : vector<48x256xf32>
    %cst_17 = arith.constant 0.000000e+00 : f32
    %26 = vector.broadcast %cst_17 : f32 to vector<48x256xf32>
    %27 = arith.maximumf %25, %26 : vector<48x256xf32>
    %c0_18 = arith.constant 0 : index
    %c0_19 = arith.constant 0 : index
    %28 = vector.load %arg6[%c0_18, %c0_19] : memref<1x256xf32, #tpu.memory_space<vmem>>, vector<1x256xf32>
    %29 = vector.broadcast %28 : vector<1x256xf32> to vector<48x256xf32>
    %30 = arith.mulf %27, %29 : vector<48x256xf32>
    %cst_20 = arith.constant dense<0.000000e+00> : vector<48xf32>
    %31 = vector.multi_reduction <add>, %30, %cst_20 [1] : vector<48x256xf32> to vector<48xf32>
    %32 = vector.shape_cast %31 : vector<48xf32> to vector<48x1xf32>
    %c0_21 = arith.constant 0 : index
    %c0_22 = arith.constant 0 : index
    %33 = memref.load %arg8[%c0_21, %c0_22] : memref<1x1xf32, #tpu.memory_space<smem>>
    %34 = vector.broadcast %33 : f32 to vector<48x1xf32>
    %35 = arith.addf %32, %34 : vector<48x1xf32>
    %36 = math.tanh %35 : vector<48x1xf32>
    %37 = vector.shape_cast %36 : vector<48x1xf32> to vector<48x1xf32>
    %38 = vector.broadcast %37 : vector<48x1xf32> to vector<48x128xf32>
    %c0_23 = arith.constant 0 : index
    %c0_24 = arith.constant 0 : index
    %39 = vector.load %arg9[%c0_23, %c0_24] : memref<48x128xf32, #tpu.memory_space<vmem>>, vector<48x128xf32>
    tpu.vector_store %arg9[%c0_23, %c0_24], %38 {strides = array<i32>} : memref<48x128xf32, #tpu.memory_space<vmem>>, vector<48x128xf32>,
    return
  }
  func.func @transform_0(%arg0: i32) -> (i32, i32) {
    %c0_i32 = arith.constant 0 : i32
    %c0_i32_0 = arith.constant 0 : i32
    return %arg0, %c0_i32 : i32, i32
  }
  func.func @transform_1(%arg0: i32) -> (i32, i32) {
    %c0_i32 = arith.constant 0 : i32
    %c0_i32_0 = arith.constant 0 : i32
    return %arg0, %c0_i32 : i32, i32
  }
  func.func @transform_2(%arg0: i32) -> (i32, i32) {
    %c0_i32 = arith.constant 0 : i32
    %c0_i32_0 = arith.constant 0 : i32
    %c0_i32_1 = arith.constant 0 : i32
    return %c0_i32, %c0_i32_0 : i32, i32
  }
  func.func @transform_3(%arg0: i32) -> (i32, i32) {
    %c0_i32 = arith.constant 0 : i32
    %c0_i32_0 = arith.constant 0 : i32
    %c0_i32_1 = arith.constant 0 : i32
    return %c0_i32, %c0_i32_0 : i32, i32
  }
  func.func @transform_4(%arg0: i32) -> (i32, i32) {
    %c0_i32 = arith.constant 0 : i32
    %c0_i32_0 = arith.constant 0 : i32
    %c0_i32_1 = arith.constant 0 : i32
    return %c0_i32, %c0_i32_0 : i32, i32
  }
  func.func @transform_5(%arg0: i32) -> (i32, i32) {
    %c0_i32 = arith.constant 0 : i32
    %c0_i32_0 = arith.constant 0 : i32
    %c0_i32_1 = arith.constant 0 : i32
    return %c0_i32, %c0_i32_0 : i32, i32
  }
  func.func @transform_6(%arg0: i32) -> (i32, i32) {
    %c0_i32 = arith.constant 0 : i32
    %c0_i32_0 = arith.constant 0 : i32
    %c0_i32_1 = arith.constant 0 : i32
    return %c0_i32, %c0_i32_0 : i32, i32
  }
  func.func @transform_7(%arg0: i32) -> (i32, i32) {
    %c0_i32 = arith.constant 0 : i32
    %c0_i32_0 = arith.constant 0 : i32
    %c0_i32_1 = arith.constant 0 : i32
    return %c0_i32, %c0_i32_0 : i32, i32
  }
  func.func @transform_8(%arg0: i32) -> (i32, i32) {
    %c0_i32 = arith.constant 0 : i32
    %c0_i32_0 = arith.constant 0 : i32
    return %arg0, %c0_i32 : i32, i32
  }
}

</mosaic_0001>

<llo_original>
// kernel: value_network_forward.1
$region0: #{value_network_forward.1}
  #allocation0 [shape = 'u32[]', space=smem, size = 0x4, offset = 0x4, fixed_abs, tag = 'smem constant byte address 0x4 - core index']
  #allocation1 [shape = 'u32[72,128]{1,0:T(1,128)}', space=vmem, size = 0x9000, scoped, tag = 'internal scratch']
  #allocation2 [shape = 'f32[1,1]{1,0:T(1,128)S(6)}', space=smem, size = 0x200, scoped, tag = 'scoped memory for value_network_forward.1']
  %s0 = inlined_call_operand.hbm [shape: f32[48,128], index: 0, kind: input, shape index: {}]
  %s1 = inlined_call_operand.hbm [shape: f32[48,128], index: 1, kind: input, shape index: {}]
  %s2 = inlined_call_operand.hbm [shape: bf16[128,256], index: 2, kind: input, shape index: {}]
  %s3 = inlined_call_operand.hbm [shape: bf16[128,256], index: 3, kind: input, shape index: {}]
  %s4 = inlined_call_operand.hbm [shape: bf16[512,256], index: 4, kind: input, shape index: {}]
  %s5 = inlined_call_operand.vmem [shape: f32[1,256], index: 5, kind: input, shape index: {}]
  %s6 = inlined_call_operand.hbm [shape: f32[1,768], index: 6, kind: input, shape index: {}]
  %s7 = inlined_call_operand.<no memory space> [shape: f32[1,1], index: 7, kind: input, shape index: {}]
  %s8 = inlined_call_operand.vmem [shape: f32[48,128], index: 8, kind: output, shape index: {}]
  %s9 = sld [smem:[#allocation0]]
  $region66: #{value_network_forward.1} parent=0
    _
  %s11 = ssub.s32 1, %s9
  %s12 = scalar_select 0, %s11, %s9
  %13 = sst [smem:[#allocation2]] %s7
  $region1: #{value_network_forward.1} parent=0
    #allocation3 [shape = 'u8[24576]{0}', space=vmem, size = 0x6000, scoped, tag = 'input window, operand 0, single buffered']
    #allocation4 [shape = 's32[1]{0}', space=sflag, size = 0x4, scoped, tag = 'scoped memory for value_network_forward.1']
    #allocation5 [shape = 'u8[24576]{0}', space=vmem, size = 0x6000, scoped, tag = 'input window, operand 1, single buffered']
    #allocation6 [shape = 's32[1]{0}', space=sflag, size = 0x4, scoped, tag = 'scoped memory for value_network_forward.1']
    #allocation7 [shape = 'u8[65536]{0}', space=vmem, size = 0x10000, scoped, tag = 'input window, operand 2, single buffered']
    #allocation8 [shape = 'u8[65536]{0}', space=vmem, size = 0x10000, scoped, tag = 'input window, operand 3, single buffered']
    #allocation9 [shape = 's32[1]{0}', space=sflag, size = 0x4, scoped, tag = 'scoped memory for value_network_forward.1']
    #allocation10 [shape = 'u8[262144]{0}', space=vmem, size = 0x40000, scoped, tag = 'input window, operand 4, single buffered']
    #allocation11 [shape = 'u8[3072]{0}', space=vmem, size = 0xc00, scoped, tag = 'input window, operand 6, single buffered']
    #allocation12 [shape = 's32[1]{0}', space=sflag, size = 0x4, scoped, tag = 'scoped memory for value_network_forward.1']
    %14 = vsyncpa [#allocation4], 0
    %15 = vsyncpa [#allocation6], 0
    %16 = vsyncpa [#allocation9], 0
    %17 = vsyncpa [#allocation12], 0
    // Predicated region
    $region2: #{value_network_forward.1} parent=1 // pred_check
      _
    $region3: #{value_network_forward.1} parent=1 // pred_check_branch
      %19 = sbr.rel (0) target = $region5
    $region4: #{value_network_forward.1} parent=1 // pred_region
      %21 = vsyncadd [#allocation4], 0
      %s22 = sshll.u32 %s0, 4
      %s23 = int_to_ptr.hbm [resolvable:$true] %s22
      %s24 = sshll.u32 [#allocation3], 4
      %s25 = int_to_ptr.vmem [resolvable:$true] %s24
      %30 = dma.hbm_to_vmem [thread:$0]  %s23, 768, %s25, [#allocation4], 128, 128, 8
    $region5: #{value_network_forward.1} parent=1 // pred_fallthru
      _
    // Predicated region
    $region6: #{value_network_forward.1} parent=1 // pred_check
      _
    $region7: #{value_network_forward.1} parent=1 // pred_check_branch
      %32 = sbr.rel (0) target = $region9
    $region8: #{value_network_forward.1} parent=1 // pred_region
      %34 = vsyncadd [#allocation6], 0
      %s35 = sshll.u32 %s1, 4
      %s36 = int_to_ptr.hbm [resolvable:$true] %s35
      %s37 = sshll.u32 [#allocation5], 4
      %s38 = int_to_ptr.vmem [resolvable:$true] %s37
      %43 = dma.hbm_to_vmem [thread:$0]  %s36, 768, %s38, [#allocation6], 128, 128, 8
    $region9: #{value_network_forward.1} parent=1 // pred_fallthru
      _
    // Predicated region
    $region10: #{value_network_forward.1} parent=1 // pred_check
      _
    $region11: #{value_network_forward.1} parent=1 // pred_check_branch
      %45 = sbr.rel (0) target = $region13
    $region12: #{value_network_forward.1} parent=1 // pred_region
      %47 = vsyncadd [#allocation6], 0
      %s48 = sshll.u32 %s2, 4
      %s49 = int_to_ptr.hbm [resolvable:$true] %s48
      %s50 = sshll.u32 [#allocation7], 4
      %s51 = int_to_ptr.vmem [resolvable:$true] %s50
      %56 = dma.hbm_to_vmem [thread:$0]  %s49, 2048, %s51, [#allocation6], 128, 128, 8
    $region13: #{value_network_forward.1} parent=1 // pred_fallthru
      _
    // Predicated region
    $region14: #{value_network_forward.1} parent=1 // pred_check
      _
    $region15: #{value_network_forward.1} parent=1 // pred_check_branch
      %58 = sbr.rel (0) target = $region17
    $region16: #{value_network_forward.1} parent=1 // pred_region
      %60 = vsyncadd [#allocation9], 0
      %s61 = sshll.u32 %s3, 4
      %s62 = int_to_ptr.hbm [resolvable:$true] %s61
      %s63 = sshll.u32 [#allocation8], 4
      %s64 = int_to_ptr.vmem [resolvable:$true] %s63
      %69 = dma.hbm_to_vmem [thread:$0]  %s62, 2048, %s64, [#allocation9], 128, 128, 8
    $region17: #{value_network_forward.1} parent=1 // pred_fallthru
      _
    // Predicated region
    $region18: #{value_network_forward.1} parent=1 // pred_check
      _
    $region19: #{value_network_forward.1} parent=1 // pred_check_branch
      %71 = sbr.rel (0) target = $region21
    $region20: #{value_network_forward.1} parent=1 // pred_region
      %73 = vsyncadd [#allocation9], 0
      %s74 = sshll.u32 %s4, 4
      %s75 = int_to_ptr.hbm [resolvable:$true] %s74
      %s76 = sshll.u32 [#allocation10], 4
      %s77 = int_to_ptr.vmem [resolvable:$true] %s76
      %82 = dma.hbm_to_vmem [thread:$0]  %s75, 8192, %s77, [#allocation9], 128, 128, 8
    $region21: #{value_network_forward.1} parent=1 // pred_fallthru
      _
    // Predicated region
    $region22: #{value_network_forward.1} parent=1 // pred_check
      _
    $region23: #{value_network_forward.1} parent=1 // pred_check_branch
      %84 = sbr.rel (0) target = $region25
    $region24: #{value_network_forward.1} parent=1 // pred_region
      _
    $region25: #{value_network_forward.1} parent=1 // pred_fallthru
      _
    // Predicated region
    $region26: #{value_network_forward.1} parent=1 // pred_check
      _
    $region27: #{value_network_forward.1} parent=1 // pred_check_branch
      %86 = sbr.rel (0) target = $region29
    $region28: #{value_network_forward.1} parent=1 // pred_region
      %88 = vsyncadd [#allocation12], 0
      %s90 = sshll.u32 %s6, 4
      %s91 = int_to_ptr.hbm [resolvable:$true] %s90
      %s92 = sshll.u32 [#allocation11], 4
      %s93 = int_to_ptr.vmem [resolvable:$true] %s92
      %95 = dma.hbm_to_vmem [thread:$0]  %s91, 96, %s93, [#allocation12]
    $region29: #{value_network_forward.1} parent=1 // pred_fallthru
      _
    // Predicated region
    $region30: #{value_network_forward.1} parent=1 // pred_check
      _
    $region31: #{value_network_forward.1} parent=1 // pred_check_branch
      %97 = sbr.rel (0) target = $region33
    $region32: #{value_network_forward.1} parent=1 // pred_region
      _
    $region33: #{value_network_forward.1} parent=1 // pred_fallthru
      _
    // Predicated region
    $region34: #{value_network_forward.1} parent=1 // pred_check
      _
    $region35: #{value_network_forward.1} parent=1 // pred_check_branch
      %99 = sbr.rel (0) target = $region37
    $region36: #{value_network_forward.1} parent=1 // pred_region
      %101 = dma.done [#allocation4], 768
    $region37: #{value_network_forward.1} parent=1 // pred_fallthru
      _
    // Predicated region
    $region38: #{value_network_forward.1} parent=1 // pred_check
      _
    $region39: #{value_network_forward.1} parent=1 // pred_check_branch
      %103 = sbr.rel (0) target = $region41
    $region40: #{value_network_forward.1} parent=1 // pred_region
      %105 = dma.done [#allocation6], 768
    $region41: #{value_network_forward.1} parent=1 // pred_fallthru
      _
    // Predicated region
    $region42: #{value_network_forward.1} parent=1 // pred_check
      _
    $region43: #{value_network_forward.1} parent=1 // pred_check_branch
      %107 = sbr.rel (0) target = $region45
    $region44: #{value_network_forward.1} parent=1 // pred_region
      %109 = dma.done [#allocation6], 2048
    $region45: #{value_network_forward.1} parent=1 // pred_fallthru
      _
    // Predicated region
    $region46: #{value_network_forward.1} parent=1 // pred_check
      _
    $region47: #{value_network_forward.1} parent=1 // pred_check_branch
      %111 = sbr.rel (0) target = $region49
    $region48: #{value_network_forward.1} parent=1 // pred_region
      %113 = dma.done [#allocation9], 2048
    $region49: #{value_network_forward.1} parent=1 // pred_fallthru
      _
    // Predicated region
    $region50: #{value_network_forward.1} parent=1 // pred_check
      _
    $region51: #{value_network_forward.1} parent=1 // pred_check_branch
      %115 = sbr.rel (0) target = $region53
    $region52: #{value_network_forward.1} parent=1 // pred_region
      %117 = dma.done [#allocation9], 8192
    $region53: #{value_network_forward.1} parent=1 // pred_fallthru
      _
    // Predicated region
    $region54: #{value_network_forward.1} parent=1 // pred_check
      _
    $region55: #{value_network_forward.1} parent=1 // pred_check_branch
      %119 = sbr.rel (0) target = $region57
    $region56: #{value_network_forward.1} parent=1 // pred_region
      %121 = dma.done [#allocation12], 96
    $region57: #{value_network_forward.1} parent=1 // pred_fallthru
      _
    %v122 = vld [vmem:[#allocation3] sm:$0xff]
    %v123 = vld [vmem:[#allocation3 + $0x8] sm:$0xff]
    %v124 = vld [vmem:[#allocation3 + $0x10] sm:$0xff]
    %v125 = vld [vmem:[#allocation3 + $0x18] sm:$0xff]
    %v126 = vld [vmem:[#allocation3 + $0x20] sm:$0xff]
    %v127 = vld [vmem:[#allocation3 + $0x28] sm:$0xff]
    %v128 = vpack.c.bf16 %v123, %v122
    %v129 = vpack.c.bf16 %v125, %v124
    %v130 = vpack.c.bf16 %v127, %v126
    %v131 = vld [vmem:[#allocation5] sm:$0xff]
    %v132 = vld [vmem:[#allocation5 + $0x8] sm:$0xff]
    %v133 = vld [vmem:[#allocation5 + $0x10] sm:$0xff]
    %v134 = vld [vmem:[#allocation5 + $0x18] sm:$0xff]
    %v135 = vld [vmem:[#allocation5 + $0x20] sm:$0xff]
    %v136 = vld [vmem:[#allocation5 + $0x28] sm:$0xff]
    %v137 = vpack.c.bf16 %v132, %v131
    %v138 = vpack.c.bf16 %v134, %v133
    %v139 = vpack.c.bf16 %v136, %v135
    %v140 = vld [vmem:[#allocation11] sm:$0x3]
    %v141 = vld [vmem:[#allocation11 + $0x2] sm:$0x3]
    %v142 = vld [vmem:[#allocation11 + $0x4] sm:$0x3]
    %v143 = vld [vmem:[#allocation7] sm:$0xff]
    %v144 = vld [vmem:[#allocation7 + $0x8] sm:$0xff]
    %v145 = vld [vmem:[#allocation7 + $0x10] sm:$0xff]
    %v146 = vld [vmem:[#allocation7 + $0x18] sm:$0xff]
    %v147 = vld [vmem:[#allocation7 + $0x20] sm:$0xff]
    %v148 = vld [vmem:[#allocation7 + $0x28] sm:$0xff]
    %v149 = vld [vmem:[#allocation7 + $0x30] sm:$0xff]
    %v150 = vld [vmem:[#allocation7 + $0x38] sm:$0xff]
    %v151 = vld [vmem:[#allocation7 + $0x40] sm:$0xff]
    %v152 = vld [vmem:[#allocation7 + $0x48] sm:$0xff]
    %v153 = vld [vmem:[#allocation7 + $0x50] sm:$0xff]
    %v154 = vld [vmem:[#allocation7 + $0x58] sm:$0xff]
    %v155 = vld [vmem:[#allocation7 + $0x60] sm:$0xff]
    %v156 = vld [vmem:[#allocation7 + $0x68] sm:$0xff]
    %v157 = vld [vmem:[#allocation7 + $0x70] sm:$0xff]
    %v158 = vld [vmem:[#allocation7 + $0x78] sm:$0xff]
    %v160 = vperm.slane %v140, 0
    %v161 = vperm.slane %v140, 1
    %v180 = vunpack.c.l.b16 %v143
    %v181 = vunpack.c.h.b16 %v143
    %v182 = vunpack.c.l.b16 %v144
    %v183 = vunpack.c.h.b16 %v144
    %v184 = vunpack.c.l.b16 %v145
    %v185 = vunpack.c.h.b16 %v145
    %v186 = vunpack.c.l.b16 %v146
    %v187 = vunpack.c.h.b16 %v146
    %v188 = vunpack.c.l.b16 %v147
    %v189 = vunpack.c.h.b16 %v147
    %v190 = vunpack.c.l.b16 %v148
    %v191 = vunpack.c.h.b16 %v148
    %v192 = vunpack.c.l.b16 %v149
    %v193 = vunpack.c.h.b16 %v149
    %v194 = vunpack.c.l.b16 %v150
    %v195 = vunpack.c.h.b16 %v150
    %v196 = vunpack.c.l.b16 %v151
    %v197 = vunpack.c.h.b16 %v151
    %v198 = vunpack.c.l.b16 %v152
    %v199 = vunpack.c.h.b16 %v152
    %v200 = vunpack.c.l.b16 %v153
    %v201 = vunpack.c.h.b16 %v153
    %v202 = vunpack.c.l.b16 %v154
    %v203 = vunpack.c.h.b16 %v154
    %v204 = vunpack.c.l.b16 %v155
    %v205 = vunpack.c.h.b16 %v155
    %v206 = vunpack.c.l.b16 %v156
    %v207 = vunpack.c.h.b16 %v156
    %v208 = vunpack.c.l.b16 %v157
    %v209 = vunpack.c.h.b16 %v157
    %v210 = vunpack.c.l.b16 %v158
    %v211 = vunpack.c.h.b16 %v158
    %v212 = vpack.c.b16 %v182, %v180
    %v213 = vpack.c.b16 %v183, %v181
    %v214 = vpack.c.b16 %v186, %v184
    %v215 = vpack.c.b16 %v187, %v185
    %v216 = vpack.c.b16 %v190, %v188
    %v217 = vpack.c.b16 %v191, %v189
    %v218 = vpack.c.b16 %v194, %v192
    %v219 = vpack.c.b16 %v195, %v193
    %v220 = vpack.c.b16 %v198, %v196
    %v221 = vpack.c.b16 %v199, %v197
    %v222 = vpack.c.b16 %v202, %v200
    %v223 = vpack.c.b16 %v203, %v201
    %v224 = vpack.c.b16 %v206, %v204
    %v225 = vpack.c.b16 %v207, %v205
    %v226 = vpack.c.b16 %v210, %v208
    %v227 = vpack.c.b16 %v211, %v209
    %244 = vmatpush.bf16.msra.mxu0 %v226
    %245 = vmatpush.bf16.msra.mxu0 %v224
    %246 = vmatpush.bf16.msra.mxu0 %v222
    %247 = vmatpush.bf16.msra.mxu0 %v220
    %248 = vmatpush.bf16.msra.mxu0 %v218
    %249 = vmatpush.bf16.msra.mxu0 %v216
    %250 = vmatpush.bf16.msra.mxu0 %v214
    %251 = vmatpush.bf16.msra.mxu0 %v212
    %252 = vmatmul.bf16.gmra.mxu0 %v128
    %v253 = vpop.f32.mrf.mxu0
    %v254 = vadd.f32 %v160, %v253
    %v255 = vpop.f32.mrf.mxu0
    %v256 = vadd.f32 %v160, %v255
    %257 = vmatmul.bf16.gmra.mxu0 %v129
    %v258 = vpop.f32.mrf.mxu0
    %v259 = vadd.f32 %v160, %v258
    %v260 = vpop.f32.mrf.mxu0
    %v261 = vadd.f32 %v160, %v260
    %262 = vmatmul.bf16.gmra.mxu0 %v130
    %v263 = vpop.f32.mrf.mxu0
    %v264 = vadd.f32 %v160, %v263
    %v265 = vpop.f32.mrf.mxu0
    %v266 = vadd.f32 %v160, %v265
    %267 = vdwg.mxu0
    %268 = vmatpush.bf16.msra.mxu0 %v227
    %269 = vmatpush.bf16.msra.mxu0 %v225
    %270 = vmatpush.bf16.msra.mxu0 %v223
    %271 = vmatpush.bf16.msra.mxu0 %v221
    %272 = vmatpush.bf16.msra.mxu0 %v219
    %273 = vmatpush.bf16.msra.mxu0 %v217
    %274 = vmatpush.bf16.msra.mxu0 %v215
    %275 = vmatpush.bf16.msra.mxu0 %v213
    %276 = vmatmul.bf16.gmra.mxu0 %v128
    %v277 = vpop.f32.mrf.mxu0
    %v278 = vadd.f32 %v161, %v277
    %v279 = vpop.f32.mrf.mxu0
    %v280 = vadd.f32 %v161, %v279
    %281 = vmatmul.bf16.gmra.mxu0 %v129
    %v282 = vpop.f32.mrf.mxu0
    %v283 = vadd.f32 %v161, %v282
    %v284 = vpop.f32.mrf.mxu0
    %v285 = vadd.f32 %v161, %v284
    %286 = vmatmul.bf16.gmra.mxu0 %v130
    %v287 = vpop.f32.mrf.mxu0
    %v288 = vadd.f32 %v161, %v287
    %v289 = vpop.f32.mrf.mxu0
    %v290 = vadd.f32 %v161, %v289
    %291 = vdwg.mxu0
    %v292 = vmax.f32 %v254, 0.0
    %v293 = vmax.f32 %v278, 0.0
    %v294 = vmax.f32 %v256, 0.0
    %v295 = vmax.f32 %v280, 0.0
    %v296 = vmax.f32 %v259, 0.0
    %v297 = vmax.f32 %v283, 0.0
    %v298 = vmax.f32 %v261, 0.0
    %v299 = vmax.f32 %v285, 0.0
    %v300 = vmax.f32 %v264, 0.0
    %v301 = vmax.f32 %v288, 0.0
    %v302 = vmax.f32 %v266, 0.0
    %v303 = vmax.f32 %v290, 0.0
    %v304 = vld [vmem:[#allocation8] sm:$0xff]
    %v305 = vld [vmem:[#allocation8 + $0x8] sm:$0xff]
    %v306 = vld [vmem:[#allocation8 + $0x10] sm:$0xff]
    %v307 = vld [vmem:[#allocation8 + $0x18] sm:$0xff]
    %v308 = vld [vmem:[#allocation8 + $0x20] sm:$0xff]
    %v309 = vld [vmem:[#allocation8 + $0x28] sm:$0xff]
    %v310 = vld [vmem:[#allocation8 + $0x30] sm:$0xff]
    %v311 = vld [vmem:[#allocation8 + $0x38] sm:$0xff]
    %v312 = vld [vmem:[#allocation8 + $0x40] sm:$0xff]
    %v313 = vld [vmem:[#allocation8 + $0x48] sm:$0xff]
    %v314 = vld [vmem:[#allocation8 + $0x50] sm:$0xff]
    %v315 = vld [vmem:[#allocation8 + $0x58] sm:$0xff]
    %v316 = vld [vmem:[#allocation8 + $0x60] sm:$0xff]
    %v317 = vld [vmem:[#allocation8 + $0x68] sm:$0xff]
    %v318 = vld [vmem:[#allocation8 + $0x70] sm:$0xff]
    %v319 = vld [vmem:[#allocation8 + $0x78] sm:$0xff]
    %v321 = vperm.slane %v141, 0
    %v322 = vperm.slane %v141, 1
    %v341 = vunpack.c.l.b16 %v304
    %v342 = vunpack.c.h.b16 %v304
    %v343 = vunpack.c.l.b16 %v305
    %v344 = vunpack.c.h.b16 %v305
    %v345 = vunpack.c.l.b16 %v306
    %v346 = vunpack.c.h.b16 %v306
    %v347 = vunpack.c.l.b16 %v307
    %v348 = vunpack.c.h.b16 %v307
    %v349 = vunpack.c.l.b16 %v308
    %v350 = vunpack.c.h.b16 %v308
    %v351 = vunpack.c.l.b16 %v309
    %v352 = vunpack.c.h.b16 %v309
    %v353 = vunpack.c.l.b16 %v310
    %v354 = vunpack.c.h.b16 %v310
    %v355 = vunpack.c.l.b16 %v311
    %v356 = vunpack.c.h.b16 %v311
    %v357 = vunpack.c.l.b16 %v312
    %v358 = vunpack.c.h.b16 %v312
    %v359 = vunpack.c.l.b16 %v313
    %v360 = vunpack.c.h.b16 %v313
    %v361 = vunpack.c.l.b16 %v314
    %v362 = vunpack.c.h.b16 %v314
    %v363 = vunpack.c.l.b16 %v315
    %v364 = vunpack.c.h.b16 %v315
    %v365 = vunpack.c.l.b16 %v316
    %v366 = vunpack.c.h.b16 %v316
    %v367 = vunpack.c.l.b16 %v317
    %v368 = vunpack.c.h.b16 %v317
    %v369 = vunpack.c.l.b16 %v318
    %v370 = vunpack.c.h.b16 %v318
    %v371 = vunpack.c.l.b16 %v319
    %v372 = vunpack.c.h.b16 %v319
    %v373 = vpack.c.b16 %v343, %v341
    %v374 = vpack.c.b16 %v344, %v342
    %v375 = vpack.c.b16 %v347, %v345
    %v376 = vpack.c.b16 %v348, %v346
    %v377 = vpack.c.b16 %v351, %v349
    %v378 = vpack.c.b16 %v352, %v350
    %v379 = vpack.c.b16 %v355, %v353
    %v380 = vpack.c.b16 %v356, %v354
    %v381 = vpack.c.b16 %v359, %v357
    %v382 = vpack.c.b16 %v360, %v358
    %v383 = vpack.c.b16 %v363, %v361
    %v384 = vpack.c.b16 %v364, %v362
    %v385 = vpack.c.b16 %v367, %v365
    %v386 = vpack.c.b16 %v368, %v366
    %v387 = vpack.c.b16 %v371, %v369
    %v388 = vpack.c.b16 %v372, %v370
    %405 = vmatpush.bf16.msra.mxu0 %v387
    %406 = vmatpush.bf16.msra.mxu0 %v385
    %407 = vmatpush.bf16.msra.mxu0 %v383
    %408 = vmatpush.bf16.msra.mxu0 %v381
    %409 = vmatpush.bf16.msra.mxu0 %v379
    %410 = vmatpush.bf16.msra.mxu0 %v377
    %411 = vmatpush.bf16.msra.mxu0 %v375
    %412 = vmatpush.bf16.msra.mxu0 %v373
    %413 = vmatmul.bf16.gmra.mxu0 %v137
    %v414 = vpop.f32.mrf.mxu0
    %v415 = vadd.f32 %v321, %v414
    %v416 = vpop.f32.mrf.mxu0
    %v417 = vadd.f32 %v321, %v416
    %418 = vmatmul.bf16.gmra.mxu0 %v138
    %v419 = vpop.f32.mrf.mxu0
    %v420 = vadd.f32 %v321, %v419
    %v421 = vpop.f32.mrf.mxu0
    %v422 = vadd.f32 %v321, %v421
    %423 = vmatmul.bf16.gmra.mxu0 %v139
    %v424 = vpop.f32.mrf.mxu0
    %v425 = vadd.f32 %v321, %v424
    %v426 = vpop.f32.mrf.mxu0
    %v427 = vadd.f32 %v321, %v426
    %428 = vdwg.mxu0
    %429 = vmatpush.bf16.msra.mxu0 %v388
    %430 = vmatpush.bf16.msra.mxu0 %v386
    %431 = vmatpush.bf16.msra.mxu0 %v384
    %432 = vmatpush.bf16.msra.mxu0 %v382
    %433 = vmatpush.bf16.msra.mxu0 %v380
    %434 = vmatpush.bf16.msra.mxu0 %v378
    %435 = vmatpush.bf16.msra.mxu0 %v376
    %436 = vmatpush.bf16.msra.mxu0 %v374
    %437 = vmatmul.bf16.gmra.mxu0 %v137
    %v438 = vpop.f32.mrf.mxu0
    %v439 = vadd.f32 %v322, %v438
    %v440 = vpop.f32.mrf.mxu0
    %v441 = vadd.f32 %v322, %v440
    %442 = vmatmul.bf16.gmra.mxu0 %v138
    %v443 = vpop.f32.mrf.mxu0
    %v444 = vadd.f32 %v322, %v443
    %v445 = vpop.f32.mrf.mxu0
    %v446 = vadd.f32 %v322, %v445
    %447 = vmatmul.bf16.gmra.mxu0 %v139
    %v448 = vpop.f32.mrf.mxu0
    %v449 = vadd.f32 %v322, %v448
    %v450 = vpop.f32.mrf.mxu0
    %v451 = vadd.f32 %v322, %v450
    %452 = vdwg.mxu0
    %v453 = vmax.f32 %v415, 0.0
    %v454 = vmax.f32 %v439, 0.0
    %v455 = vmax.f32 %v417, 0.0
    %v456 = vmax.f32 %v441, 0.0
    %v457 = vmax.f32 %v420, 0.0
    %v458 = vmax.f32 %v444, 0.0
    %v459 = vmax.f32 %v422, 0.0
    %v460 = vmax.f32 %v446, 0.0
    %v461 = vmax.f32 %v425, 0.0
    %v462 = vmax.f32 %v449, 0.0
    %v463 = vmax.f32 %v427, 0.0
    %v464 = vmax.f32 %v451, 0.0
    %v465 = vpack.c.bf16 %v293, %v292
    %v466 = vpack.c.bf16 %v295, %v294
    %v467 = vpack.c.bf16 %v297, %v296
    %v468 = vpack.c.bf16 %v299, %v298
    %v469 = vpack.c.bf16 %v301, %v300
    %v470 = vpack.c.bf16 %v303, %v302
    %v471 = vpack.c.bf16 %v454, %v453
    %v472 = vpack.c.bf16 %v456, %v455
    %v473 = vpack.c.bf16 %v458, %v457
    %v474 = vpack.c.bf16 %v460, %v459
    %v475 = vpack.c.bf16 %v462, %v461
    %v476 = vpack.c.bf16 %v464, %v463
    %v483 = vunpack.c.l.b16 %v465
    %v484 = vunpack.c.h.b16 %v465
    %v485 = vunpack.c.l.b16 %v466
    %v486 = vunpack.c.h.b16 %v466
    %v487 = vunpack.c.l.b16 %v467
    %v488 = vunpack.c.h.b16 %v467
    %v489 = vunpack.c.l.b16 %v468
    %v490 = vunpack.c.h.b16 %v468
    %v491 = vunpack.c.l.b16 %v469
    %v492 = vunpack.c.h.b16 %v469
    %v493 = vunpack.c.l.b16 %v470
    %v494 = vunpack.c.h.b16 %v470
    %v495 = vpack.c.b16 %v485, %v483
    %v496 = vpack.c.b16 %v486, %v484
    %v497 = vpack.c.b16 %v489, %v487
    %v498 = vpack.c.b16 %v490, %v488
    %v499 = vpack.c.b16 %v493, %v491
    %v500 = vpack.c.b16 %v494, %v492
    %v513 = vunpack.c.l.b16 %v471
    %v514 = vunpack.c.h.b16 %v471
    %v515 = vunpack.c.l.b16 %v472
    %v516 = vunpack.c.h.b16 %v472
    %v517 = vunpack.c.l.b16 %v473
    %v518 = vunpack.c.h.b16 %v473
    %v519 = vunpack.c.l.b16 %v474
    %v520 = vunpack.c.h.b16 %v474
    %v521 = vunpack.c.l.b16 %v475
    %v522 = vunpack.c.h.b16 %v475
    %v523 = vunpack.c.l.b16 %v476
    %v524 = vunpack.c.h.b16 %v476
    %v525 = vpack.c.b16 %v515, %v513
    %v526 = vpack.c.b16 %v516, %v514
    %v527 = vpack.c.b16 %v519, %v517
    %v528 = vpack.c.b16 %v520, %v518
    %v529 = vpack.c.b16 %v523, %v521
    %v530 = vpack.c.b16 %v524, %v522
    %v537 = vld [vmem:[#allocation10] sm:$0xff]
    %v538 = vld [vmem:[#allocation10 + $0x8] sm:$0xff]
    %v539 = vld [vmem:[#allocation10 + $0x10] sm:$0xff]
    %v540 = vld [vmem:[#allocation10 + $0x18] sm:$0xff]
    %v541 = vld [vmem:[#allocation10 + $0x20] sm:$0xff]
    %v542 = vld [vmem:[#allocation10 + $0x28] sm:$0xff]
    %v543 = vld [vmem:[#allocation10 + $0x30] sm:$0xff]
    %v544 = vld [vmem:[#allocation10 + $0x38] sm:$0xff]
    %v545 = vld [vmem:[#allocation10 + $0x40] sm:$0xff]
    %v546 = vld [vmem:[#allocation10 + $0x48] sm:$0xff]
    %v547 = vld [vmem:[#allocation10 + $0x50] sm:$0xff]
    %v548 = vld [vmem:[#allocation10 + $0x58] sm:$0xff]
    %v549 = vld [vmem:[#allocation10 + $0x60] sm:$0xff]
    %v550 = vld [vmem:[#allocation10 + $0x68] sm:$0xff]
    %v551 = vld [vmem:[#allocation10 + $0x70] sm:$0xff]
    %v552 = vld [vmem:[#allocation10 + $0x78] sm:$0xff]
    %v553 = vld [vmem:[#allocation10 + $0x80] sm:$0xff]
    %v554 = vld [vmem:[#allocation10 + $0x88] sm:$0xff]
    %v555 = vld [vmem:[#allocation10 + $0x90] sm:$0xff]
    %v556 = vld [vmem:[#allocation10 + $0x98] sm:$0xff]
    %v557 = vld [vmem:[#allocation10 + $0xa0] sm:$0xff]
    %v558 = vld [vmem:[#allocation10 + $0xa8] sm:$0xff]
    %v559 = vld [vmem:[#allocation10 + $0xb0] sm:$0xff]
    %v560 = vld [vmem:[#allocation10 + $0xb8] sm:$0xff]
    %v561 = vld [vmem:[#allocation10 + $0xc0] sm:$0xff]
    %v562 = vld [vmem:[#allocation10 + $0xc8] sm:$0xff]
    %v563 = vld [vmem:[#allocation10 + $0xd0] sm:$0xff]
    %v564 = vld [vmem:[#allocation10 + $0xd8] sm:$0xff]
    %v565 = vld [vmem:[#allocation10 + $0xe0] sm:$0xff]
    %v566 = vld [vmem:[#allocation10 + $0xe8] sm:$0xff]
    %v567 = vld [vmem:[#allocation10 + $0xf0] sm:$0xff]
    %v568 = vld [vmem:[#allocation10 + $0xf8] sm:$0xff]
    %v569 = vld [vmem:[#allocation10 + $0x100] sm:$0xff]
    %v570 = vld [vmem:[#allocation10 + $0x108] sm:$0xff]
    %v571 = vld [vmem:[#allocation10 + $0x110] sm:$0xff]
    %v572 = vld [vmem:[#allocation10 + $0x118] sm:$0xff]
    %v573 = vld [vmem:[#allocation10 + $0x120] sm:$0xff]
    %v574 = vld [vmem:[#allocation10 + $0x128] sm:$0xff]
    %v575 = vld [vmem:[#allocation10 + $0x130] sm:$0xff]
    %v576 = vld [vmem:[#allocation10 + $0x138] sm:$0xff]
    %v577 = vld [vmem:[#allocation10 + $0x140] sm:$0xff]
    %v578 = vld [vmem:[#allocation10 + $0x148] sm:$0xff]
    %v579 = vld [vmem:[#allocation10 + $0x150] sm:$0xff]
    %v580 = vld [vmem:[#allocation10 + $0x158] sm:$0xff]
    %v581 = vld [vmem:[#allocation10 + $0x160] sm:$0xff]
    %v582 = vld [vmem:[#allocation10 + $0x168] sm:$0xff]
    %v583 = vld [vmem:[#allocation10 + $0x170] sm:$0xff]
    %v584 = vld [vmem:[#allocation10 + $0x178] sm:$0xff]
    %v585 = vld [vmem:[#allocation10 + $0x180] sm:$0xff]
    %v586 = vld [vmem:[#allocation10 + $0x188] sm:$0xff]
    %v587 = vld [vmem:[#allocation10 + $0x190] sm:$0xff]
    %v588 = vld [vmem:[#allocation10 + $0x198] sm:$0xff]
    %v589 = vld [vmem:[#allocation10 + $0x1a0] sm:$0xff]
    %v590 = vld [vmem:[#allocation10 + $0x1a8] sm:$0xff]
    %v591 = vld [vmem:[#allocation10 + $0x1b0] sm:$0xff]
    %v592 = vld [vmem:[#allocation10 + $0x1b8] sm:$0xff]
    %v593 = vld [vmem:[#allocation10 + $0x1c0] sm:$0xff]
    %v594 = vld [vmem:[#allocation10 + $0x1c8] sm:$0xff]
    %v595 = vld [vmem:[#allocation10 + $0x1d0] sm:$0xff]
    %v596 = vld [vmem:[#allocation10 + $0x1d8] sm:$0xff]
    %v597 = vld [vmem:[#allocation10 + $0x1e0] sm:$0xff]
    %v598 = vld [vmem:[#allocation10 + $0x1e8] sm:$0xff]
    %v599 = vld [vmem:[#allocation10 + $0x1f0] sm:$0xff]
    %v600 = vld [vmem:[#allocation10 + $0x1f8] sm:$0xff]
    %v602 = vperm.slane %v142, 0
    %v603 = vperm.slane %v142, 1
    %v670 = vunpack.c.l.b16 %v537
    %v671 = vunpack.c.h.b16 %v537
    %v672 = vunpack.c.l.b16 %v538
    %v673 = vunpack.c.h.b16 %v538
    %v674 = vunpack.c.l.b16 %v539
    %v675 = vunpack.c.h.b16 %v539
    %v676 = vunpack.c.l.b16 %v540
    %v677 = vunpack.c.h.b16 %v540
    %v678 = vunpack.c.l.b16 %v541
    %v679 = vunpack.c.h.b16 %v541
    %v680 = vunpack.c.l.b16 %v542
    %v681 = vunpack.c.h.b16 %v542
    %v682 = vunpack.c.l.b16 %v543
    %v683 = vunpack.c.h.b16 %v543
    %v684 = vunpack.c.l.b16 %v544
    %v685 = vunpack.c.h.b16 %v544
    %v686 = vunpack.c.l.b16 %v545
    %v687 = vunpack.c.h.b16 %v545
    %v688 = vunpack.c.l.b16 %v546
    %v689 = vunpack.c.h.b16 %v546
    %v690 = vunpack.c.l.b16 %v547
    %v691 = vunpack.c.h.b16 %v547
    %v692 = vunpack.c.l.b16 %v548
    %v693 = vunpack.c.h.b16 %v548
    %v694 = vunpack.c.l.b16 %v549
    %v695 = vunpack.c.h.b16 %v549
    %v696 = vunpack.c.l.b16 %v550
    %v697 = vunpack.c.h.b16 %v550
    %v698 = vunpack.c.l.b16 %v551
    %v699 = vunpack.c.h.b16 %v551
    %v700 = vunpack.c.l.b16 %v552
    %v701 = vunpack.c.h.b16 %v552
    %v702 = vunpack.c.l.b16 %v553
    %v703 = vunpack.c.h.b16 %v553
    %v704 = vunpack.c.l.b16 %v554
    %v705 = vunpack.c.h.b16 %v554
    %v706 = vunpack.c.l.b16 %v555
    %v707 = vunpack.c.h.b16 %v555
    %v708 = vunpack.c.l.b16 %v556
    %v709 = vunpack.c.h.b16 %v556
    %v710 = vunpack.c.l.b16 %v557
    %v711 = vunpack.c.h.b16 %v557
    %v712 = vunpack.c.l.b16 %v558
    %v713 = vunpack.c.h.b16 %v558
    %v714 = vunpack.c.l.b16 %v559
    %v715 = vunpack.c.h.b16 %v559
    %v716 = vunpack.c.l.b16 %v560
    %v717 = vunpack.c.h.b16 %v560
    %v718 = vunpack.c.l.b16 %v561
    %v719 = vunpack.c.h.b16 %v561
    %v720 = vunpack.c.l.b16 %v562
    %v721 = vunpack.c.h.b16 %v562
    %v722 = vunpack.c.l.b16 %v563
    %v723 = vunpack.c.h.b16 %v563
    %v724 = vunpack.c.l.b16 %v564
    %v725 = vunpack.c.h.b16 %v564
    %v726 = vunpack.c.l.b16 %v565
    %v727 = vunpack.c.h.b16 %v565
    %v728 = vunpack.c.l.b16 %v566
    %v729 = vunpack.c.h.b16 %v566
    %v730 = vunpack.c.l.b16 %v567
    %v731 = vunpack.c.h.b16 %v567
    %v732 = vunpack.c.l.b16 %v568
    %v733 = vunpack.c.h.b16 %v568
    %v734 = vunpack.c.l.b16 %v569
    %v735 = vunpack.c.h.b16 %v569
    %v736 = vunpack.c.l.b16 %v570
    %v737 = vunpack.c.h.b16 %v570
    %v738 = vunpack.c.l.b16 %v571
    %v739 = vunpack.c.h.b16 %v571
    %v740 = vunpack.c.l.b16 %v572
    %v741 = vunpack.c.h.b16 %v572
    %v742 = vunpack.c.l.b16 %v573
    %v743 = vunpack.c.h.b16 %v573
    %v744 = vunpack.c.l.b16 %v574
    %v745 = vunpack.c.h.b16 %v574
    %v746 = vunpack.c.l.b16 %v575
    %v747 = vunpack.c.h.b16 %v575
    %v748 = vunpack.c.l.b16 %v576
    %v749 = vunpack.c.h.b16 %v576
    %v750 = vunpack.c.l.b16 %v577
    %v751 = vunpack.c.h.b16 %v577
    %v752 = vunpack.c.l.b16 %v578
    %v753 = vunpack.c.h.b16 %v578
    %v754 = vunpack.c.l.b16 %v579
    %v755 = vunpack.c.h.b16 %v579
    %v756 = vunpack.c.l.b16 %v580
    %v757 = vunpack.c.h.b16 %v580
    %v758 = vunpack.c.l.b16 %v581
    %v759 = vunpack.c.h.b16 %v581
    %v760 = vunpack.c.l.b16 %v582
    %v761 = vunpack.c.h.b16 %v582
    %v762 = vunpack.c.l.b16 %v583
    %v763 = vunpack.c.h.b16 %v583
    %v764 = vunpack.c.l.b16 %v584
    %v765 = vunpack.c.h.b16 %v584
    %v766 = vunpack.c.l.b16 %v585
    %v767 = vunpack.c.h.b16 %v585
    %v768 = vunpack.c.l.b16 %v586
    %v769 = vunpack.c.h.b16 %v586
    %v770 = vunpack.c.l.b16 %v587
    %v771 = vunpack.c.h.b16 %v587
    %v772 = vunpack.c.l.b16 %v588
    %v773 = vunpack.c.h.b16 %v588
    %v774 = vunpack.c.l.b16 %v589
    %v775 = vunpack.c.h.b16 %v589
    %v776 = vunpack.c.l.b16 %v590
    %v777 = vunpack.c.h.b16 %v590
    %v778 = vunpack.c.l.b16 %v591
    %v779 = vunpack.c.h.b16 %v591
    %v780 = vunpack.c.l.b16 %v592
    %v781 = vunpack.c.h.b16 %v592
    %v782 = vunpack.c.l.b16 %v593
    %v783 = vunpack.c.h.b16 %v593
    %v784 = vunpack.c.l.b16 %v594
    %v785 = vunpack.c.h.b16 %v594
    %v786 = vunpack.c.l.b16 %v595
    %v787 = vunpack.c.h.b16 %v595
    %v788 = vunpack.c.l.b16 %v596
    %v789 = vunpack.c.h.b16 %v596
    %v790 = vunpack.c.l.b16 %v597
    %v791 = vunpack.c.h.b16 %v597
    %v792 = vunpack.c.l.b16 %v598
    %v793 = vunpack.c.h.b16 %v598
    %v794 = vunpack.c.l.b16 %v599
    %v795 = vunpack.c.h.b16 %v599
    %v796 = vunpack.c.l.b16 %v600
    %v797 = vunpack.c.h.b16 %v600
    %v798 = vpack.c.b16 %v672, %v670
    %v799 = vpack.c.b16 %v673, %v671
    %v800 = vpack.c.b16 %v676, %v674
    %v801 = vpack.c.b16 %v677, %v675
    %v802 = vpack.c.b16 %v680, %v678
    %v803 = vpack.c.b16 %v681, %v679
    %v804 = vpack.c.b16 %v684, %v682
    %v805 = vpack.c.b16 %v685, %v683
    %v806 = vpack.c.b16 %v688, %v686
    %v807 = vpack.c.b16 %v689, %v687
    %v808 = vpack.c.b16 %v692, %v690
    %v809 = vpack.c.b16 %v693, %v691
    %v810 = vpack.c.b16 %v696, %v694
    %v811 = vpack.c.b16 %v697, %v695
    %v812 = vpack.c.b16 %v700, %v698
    %v813 = vpack.c.b16 %v701, %v699
    %v814 = vpack.c.b16 %v704, %v702
    %v815 = vpack.c.b16 %v705, %v703
    %v816 = vpack.c.b16 %v708, %v706
    %v817 = vpack.c.b16 %v709, %v707
    %v818 = vpack.c.b16 %v712, %v710
    %v819 = vpack.c.b16 %v713, %v711
    %v820 = vpack.c.b16 %v716, %v714
    %v821 = vpack.c.b16 %v717, %v715
    %v822 = vpack.c.b16 %v720, %v718
    %v823 = vpack.c.b16 %v721, %v719
    %v824 = vpack.c.b16 %v724, %v722
    %v825 = vpack.c.b16 %v725, %v723
    %v826 = vpack.c.b16 %v728, %v726
    %v827 = vpack.c.b16 %v729, %v727
    %v828 = vpack.c.b16 %v732, %v730
    %v829 = vpack.c.b16 %v733, %v731
    %v830 = vpack.c.b16 %v736, %v734
    %v831 = vpack.c.b16 %v737, %v735
    %v832 = vpack.c.b16 %v740, %v738
    %v833 = vpack.c.b16 %v741, %v739
    %v834 = vpack.c.b16 %v744, %v742
    %v835 = vpack.c.b16 %v745, %v743
    %v836 = vpack.c.b16 %v748, %v746
    %v837 = vpack.c.b16 %v749, %v747
    %v838 = vpack.c.b16 %v752, %v750
    %v839 = vpack.c.b16 %v753, %v751
    %v840 = vpack.c.b16 %v756, %v754
    %v841 = vpack.c.b16 %v757, %v755
    %v842 = vpack.c.b16 %v760, %v758
    %v843 = vpack.c.b16 %v761, %v759
    %v844 = vpack.c.b16 %v764, %v762
    %v845 = vpack.c.b16 %v765, %v763
    %v846 = vpack.c.b16 %v768, %v766
    %v847 = vpack.c.b16 %v769, %v767
    %v848 = vpack.c.b16 %v772, %v770
    %v849 = vpack.c.b16 %v773, %v771
    %v850 = vpack.c.b16 %v776, %v774
    %v851 = vpack.c.b16 %v777, %v775
    %v852 = vpack.c.b16 %v780, %v778
    %v853 = vpack.c.b16 %v781, %v779
    %v854 = vpack.c.b16 %v784, %v782
    %v855 = vpack.c.b16 %v785, %v783
    %v856 = vpack.c.b16 %v788, %v786
    %v857 = vpack.c.b16 %v789, %v787
    %v858 = vpack.c.b16 %v792, %v790
    %v859 = vpack.c.b16 %v793, %v791
    %v860 = vpack.c.b16 %v796, %v794
    %v861 = vpack.c.b16 %v797, %v795
    %926 = vmatpush.bf16.msra.mxu0 %v812
    %927 = vmatpush.bf16.msra.mxu0 %v810
    %928 = vmatpush.bf16.msra.mxu0 %v808
    %929 = vmatpush.bf16.msra.mxu0 %v806
    %930 = vmatpush.bf16.msra.mxu0 %v804
    %931 = vmatpush.bf16.msra.mxu0 %v802
    %932 = vmatpush.bf16.msra.mxu0 %v800
    %933 = vmatpush.bf16.msra.mxu0 %v798
    %934 = vmatmul.bf16.gmra.mxu0 %v495
    %v935 = vpop.f32.mrf.mxu0
    %v936 = vadd.f32 %v602, %v935
    %v937 = vpop.f32.mrf.mxu0
    %v938 = vadd.f32 %v602, %v937
    %939 = vmatmul.bf16.gmra.mxu0 %v497
    %v940 = vpop.f32.mrf.mxu0
    %v941 = vadd.f32 %v602, %v940
    %v942 = vpop.f32.mrf.mxu0
    %v943 = vadd.f32 %v602, %v942
    %944 = vmatmul.bf16.gmra.mxu0 %v499
    %v945 = vpop.f32.mrf.mxu0
    %v946 = vadd.f32 %v602, %v945
    %v947 = vpop.f32.mrf.mxu0
    %v948 = vadd.f32 %v602, %v947
    %949 = vdwg.mxu0
    %950 = vmatpush.bf16.msra.mxu0 %v828
    %951 = vmatpush.bf16.msra.mxu0 %v826
    %952 = vmatpush.bf16.msra.mxu0 %v824
    %953 = vmatpush.bf16.msra.mxu0 %v822
    %954 = vmatpush.bf16.msra.mxu0 %v820
    %955 = vmatpush.bf16.msra.mxu0 %v818
    %956 = vmatpush.bf16.msra.mxu0 %v816
    %957 = vmatpush.bf16.msra.mxu0 %v814
    %958 = vmatmul.bf16.gmra.mxu0 %v496
    %v959 = vpop.f32.mrf.mxu0
    %v960 = vadd.f32 %v936, %v959
    %v961 = vpop.f32.mrf.mxu0
    %v962 = vadd.f32 %v938, %v961
    %963 = vmatmul.bf16.gmra.mxu0 %v498
    %v964 = vpop.f32.mrf.mxu0
    %v965 = vadd.f32 %v941, %v964
    %v966 = vpop.f32.mrf.mxu0
    %v967 = vadd.f32 %v943, %v966
    %968 = vmatmul.bf16.gmra.mxu0 %v500
    %v969 = vpop.f32.mrf.mxu0
    %v970 = vadd.f32 %v946, %v969
    %v971 = vpop.f32.mrf.mxu0
    %v972 = vadd.f32 %v948, %v971
    %973 = vdwg.mxu0
    %974 = vmatpush.bf16.msra.mxu0 %v844
    %975 = vmatpush.bf16.msra.mxu0 %v842
    %976 = vmatpush.bf16.msra.mxu0 %v840
    %977 = vmatpush.bf16.msra.mxu0 %v838
    %978 = vmatpush.bf16.msra.mxu0 %v836
    %979 = vmatpush.bf16.msra.mxu0 %v834
    %980 = vmatpush.bf16.msra.mxu0 %v832
    %981 = vmatpush.bf16.msra.mxu0 %v830
    %982 = vmatmul.bf16.gmra.mxu0 %v525
    %v983 = vpop.f32.mrf.mxu0
    %v984 = vadd.f32 %v960, %v983
    %v985 = vpop.f32.mrf.mxu0
    %v986 = vadd.f32 %v962, %v985
    %987 = vmatmul.bf16.gmra.mxu0 %v527
    %v988 = vpop.f32.mrf.mxu0
    %v989 = vadd.f32 %v965, %v988
    %v990 = vpop.f32.mrf.mxu0
    %v991 = vadd.f32 %v967, %v990
    %992 = vmatmul.bf16.gmra.mxu0 %v529
    %v993 = vpop.f32.mrf.mxu0
    %v994 = vadd.f32 %v970, %v993
    %v995 = vpop.f32.mrf.mxu0
    %v996 = vadd.f32 %v972, %v995
    %997 = vdwg.mxu0
    %998 = vmatpush.bf16.msra.mxu0 %v860
    %999 = vmatpush.bf16.msra.mxu0 %v858
    %1000 = vmatpush.bf16.msra.mxu0 %v856
    %1001 = vmatpush.bf16.msra.mxu0 %v854
    %1002 = vmatpush.bf16.msra.mxu0 %v852
    %1003 = vmatpush.bf16.msra.mxu0 %v850
    %1004 = vmatpush.bf16.msra.mxu0 %v848
    %1005 = vmatpush.bf16.msra.mxu0 %v846
    %1006 = vmatmul.bf16.gmra.mxu0 %v526
    %v1007 = vpop.f32.mrf.mxu0
    %v1008 = vadd.f32 %v984, %v1007
    %v1009 = vpop.f32.mrf.mxu0
    %v1010 = vadd.f32 %v986, %v1009
    %1011 = vmatmul.bf16.gmra.mxu0 %v528
    %v1012 = vpop.f32.mrf.mxu0
    %v1013 = vadd.f32 %v989, %v1012
    %v1014 = vpop.f32.mrf.mxu0
    %v1015 = vadd.f32 %v991, %v1014
    %1016 = vmatmul.bf16.gmra.mxu0 %v530
    %v1017 = vpop.f32.mrf.mxu0
    %v1018 = vadd.f32 %v994, %v1017
    %v1019 = vpop.f32.mrf.mxu0
    %v1020 = vadd.f32 %v996, %v1019
    %1021 = vdwg.mxu0
    %1022 = vmatpush.bf16.msra.mxu0 %v813
    %1023 = vmatpush.bf16.msra.mxu0 %v811
    %1024 = vmatpush.bf16.msra.mxu0 %v809
    %1025 = vmatpush.bf16.msra.mxu0 %v807
    %1026 = vmatpush.bf16.msra.mxu0 %v805
    %1027 = vmatpush.bf16.msra.mxu0 %v803
    %1028 = vmatpush.bf16.msra.mxu0 %v801
    %1029 = vmatpush.bf16.msra.mxu0 %v799
    %1030 = vmatmul.bf16.gmra.mxu0 %v495
    %v1031 = vpop.f32.mrf.mxu0
    %v1032 = vadd.f32 %v603, %v1031
    %v1033 = vpop.f32.mrf.mxu0
    %v1034 = vadd.f32 %v603, %v1033
    %1035 = vmatmul.bf16.gmra.mxu0 %v497
    %v1036 = vpop.f32.mrf.mxu0
    %v1037 = vadd.f32 %v603, %v1036
    %v1038 = vpop.f32.mrf.mxu0
    %v1039 = vadd.f32 %v603, %v1038
    %1040 = vmatmul.bf16.gmra.mxu0 %v499
    %v1041 = vpop.f32.mrf.mxu0
    %v1042 = vadd.f32 %v603, %v1041
    %v1043 = vpop.f32.mrf.mxu0
    %v1044 = vadd.f32 %v603, %v1043
    %1045 = vdwg.mxu0
    %1046 = vmatpush.bf16.msra.mxu0 %v829
    %1047 = vmatpush.bf16.msra.mxu0 %v827
    %1048 = vmatpush.bf16.msra.mxu0 %v825
    %1049 = vmatpush.bf16.msra.mxu0 %v823
    %1050 = vmatpush.bf16.msra.mxu0 %v821
    %1051 = vmatpush.bf16.msra.mxu0 %v819
    %1052 = vmatpush.bf16.msra.mxu0 %v817
    %1053 = vmatpush.bf16.msra.mxu0 %v815
    %1054 = vmatmul.bf16.gmra.mxu0 %v496
    %v1055 = vpop.f32.mrf.mxu0
    %v1056 = vadd.f32 %v1032, %v1055
    %v1057 = vpop.f32.mrf.mxu0
    %v1058 = vadd.f32 %v1034, %v1057
    %1059 = vmatmul.bf16.gmra.mxu0 %v498
    %v1060 = vpop.f32.mrf.mxu0
    %v1061 = vadd.f32 %v1037, %v1060
    %v1062 = vpop.f32.mrf.mxu0
    %v1063 = vadd.f32 %v1039, %v1062
    %1064 = vmatmul.bf16.gmra.mxu0 %v500
    %v1065 = vpop.f32.mrf.mxu0
    %v1066 = vadd.f32 %v1042, %v1065
    %v1067 = vpop.f32.mrf.mxu0
    %v1068 = vadd.f32 %v1044, %v1067
    %1069 = vdwg.mxu0
    %1070 = vmatpush.bf16.msra.mxu0 %v845
    %1071 = vmatpush.bf16.msra.mxu0 %v843
    %1072 = vmatpush.bf16.msra.mxu0 %v841
    %1073 = vmatpush.bf16.msra.mxu0 %v839
    %1074 = vmatpush.bf16.msra.mxu0 %v837
    %1075 = vmatpush.bf16.msra.mxu0 %v835
    %1076 = vmatpush.bf16.msra.mxu0 %v833
    %1077 = vmatpush.bf16.msra.mxu0 %v831
    %1078 = vmatmul.bf16.gmra.mxu0 %v525
    %v1079 = vpop.f32.mrf.mxu0
    %v1080 = vadd.f32 %v1056, %v1079
    %v1081 = vpop.f32.mrf.mxu0
    %v1082 = vadd.f32 %v1058, %v1081
    %1083 = vmatmul.bf16.gmra.mxu0 %v527
    %v1084 = vpop.f32.mrf.mxu0
    %v1085 = vadd.f32 %v1061, %v1084
    %v1086 = vpop.f32.mrf.mxu0
    %v1087 = vadd.f32 %v1063, %v1086
    %1088 = vmatmul.bf16.gmra.mxu0 %v529
    %v1089 = vpop.f32.mrf.mxu0
    %v1090 = vadd.f32 %v1066, %v1089
    %v1091 = vpop.f32.mrf.mxu0
    %v1092 = vadd.f32 %v1068, %v1091
    %1093 = vdwg.mxu0
    %1094 = vmatpush.bf16.msra.mxu0 %v861
    %1095 = vmatpush.bf16.msra.mxu0 %v859
    %1096 = vmatpush.bf16.msra.mxu0 %v857
    %1097 = vmatpush.bf16.msra.mxu0 %v855
    %1098 = vmatpush.bf16.msra.mxu0 %v853
    %1099 = vmatpush.bf16.msra.mxu0 %v851
    %1100 = vmatpush.bf16.msra.mxu0 %v849
    %1101 = vmatpush.bf16.msra.mxu0 %v847
    %1102 = vmatmul.bf16.gmra.mxu0 %v526
    %v1103 = vpop.f32.mrf.mxu0
    %v1104 = vadd.f32 %v1080, %v1103
    %v1105 = vpop.f32.mrf.mxu0
    %v1106 = vadd.f32 %v1082, %v1105
    %1107 = vmatmul.bf16.gmra.mxu0 %v528
    %v1108 = vpop.f32.mrf.mxu0
    %v1109 = vadd.f32 %v1085, %v1108
    %v1110 = vpop.f32.mrf.mxu0
    %v1111 = vadd.f32 %v1087, %v1110
    %1112 = vmatmul.bf16.gmra.mxu0 %v530
    %v1113 = vpop.f32.mrf.mxu0
    %v1114 = vadd.f32 %v1090, %v1113
    %v1115 = vpop.f32.mrf.mxu0
    %v1116 = vadd.f32 %v1092, %v1115
    %1117 = vdwg.mxu0
    %v1118 = vmax.f32 %v1008, 0.0
    %v1119 = vmax.f32 %v1104, 0.0
    %v1120 = vmax.f32 %v1010, 0.0
    %v1121 = vmax.f32 %v1106, 0.0
    %v1122 = vmax.f32 %v1013, 0.0
    %v1123 = vmax.f32 %v1109, 0.0
    %v1124 = vmax.f32 %v1015, 0.0
    %v1125 = vmax.f32 %v1111, 0.0
    %v1126 = vmax.f32 %v1018, 0.0
    %v1127 = vmax.f32 %v1114, 0.0
    %v1128 = vmax.f32 %v1020, 0.0
    %v1129 = vmax.f32 %v1116, 0.0
    %v1130 = vld [vmem:[%s5] sm:$0x3]
    %v1132 = vperm.slane %v1130, 0
    %v1133 = vperm.slane %v1130, 1
    %v1136 = vmul.f32 %v1118, %v1132
    %v1137 = vmul.f32 %v1119, %v1133
    %v1138 = vmul.f32 %v1120, %v1132
    %v1139 = vmul.f32 %v1121, %v1133
    %v1140 = vmul.f32 %v1122, %v1132
    %v1141 = vmul.f32 %v1123, %v1133
    %v1142 = vmul.f32 %v1124, %v1132
    %v1143 = vmul.f32 %v1125, %v1133
    %v1144 = vmul.f32 %v1126, %v1132
    %v1145 = vmul.f32 %v1127, %v1133
    %v1146 = vmul.f32 %v1128, %v1132
    %v1147 = vmul.f32 %v1129, %v1133
    %v1148 = vadd.f32 %v1136, %v1137
    %1149 = vadd.xlane.f32.xlu0 %v1148
    %v1150 = vpop.xlane.xlu0 %1149
    %v1151 = vadd.f32 %v1138, %v1139
    %1152 = vadd.xlane.f32.xlu0 %v1151
    %v1153 = vpop.xlane.xlu0 %1152
    %v1154 = vadd.f32 %v1140, %v1141
    %1155 = vadd.xlane.f32.xlu0 %v1154
    %v1156 = vpop.xlane.xlu0 %1155
    %v1157 = vadd.f32 %v1142, %v1143
    %1158 = vadd.xlane.f32.xlu0 %v1157
    %v1159 = vpop.xlane.xlu0 %1158
    %v1160 = vadd.f32 %v1144, %v1145
    %1161 = vadd.xlane.f32.xlu0 %v1160
    %v1162 = vpop.xlane.xlu0 %1161
    %v1163 = vadd.f32 %v1146, %v1147
    %1164 = vadd.xlane.f32.xlu0 %v1163
    %v1165 = vpop.xlane.xlu0 %1164
    %s1166 = sld [smem:[#allocation2]]
    %v1167 = vstv %s1166
    %v1168 = vadd.f32 %v1150, %v1167
    %v1169 = vadd.f32 %v1153, %v1167
    %v1170 = vadd.f32 %v1156, %v1167
    %v1171 = vadd.f32 %v1159, %v1167
    %v1172 = vadd.f32 %v1162, %v1167
    %v1173 = vadd.f32 %v1165, %v1167
    %v1174 = vtanh.pop %v1168
    %v1175 = vtanh.pop %v1169
    %v1176 = vtanh.pop %v1170
    %v1177 = vtanh.pop %v1171
    %v1178 = vtanh.pop %v1172
    %v1179 = vtanh.pop %v1173
    %1180 = vst [vmem:[%s8] sm:$0xff] %v1174
    %1181 = vst [vmem:[%s8 + $0x8] sm:$0xff] %v1175
    %1182 = vst [vmem:[%s8 + $0x10] sm:$0xff] %v1176
    %1183 = vst [vmem:[%s8 + $0x18] sm:$0xff] %v1177
    %1184 = vst [vmem:[%s8 + $0x20] sm:$0xff] %v1178
    %1185 = vst [vmem:[%s8 + $0x28] sm:$0xff] %v1179
    // Predicated region
    $region58: #{value_network_forward.1} parent=1 // pred_check
      _
    $region59: #{value_network_forward.1} parent=1 // pred_check_branch
      %1187 = sbr.rel (0) target = $region61
    $region60: #{value_network_forward.1} parent=1 // pred_region
      _
    $region61: #{value_network_forward.1} parent=1 // pred_fallthru
      _
    // Predicated region
    $region62: #{value_network_forward.1} parent=1 // pred_check
      _
    $region63: #{value_network_forward.1} parent=1 // pred_check_branch
      %1189 = sbr.rel (0) target = $region65
    $region64: #{value_network_forward.1} parent=1 // pred_region
      _
    $region65: #{value_network_forward.1} parent=1 // pred_fallthru
      _
    %1190 = vsyncpa [#allocation4], 1
    %1191 = vsyncpa [#allocation6], 1
    %1192 = vsyncpa [#allocation9], 1
    %1193 = vsyncpa [#allocation12], 1

</llo_original>
